<compile_context>
chip_gen: v5e
topology: v5e:2x2
jax: 0.10.0
libtpu: 0.0.40
codegen_flags: <defaults>
</compile_context>

<pallas_src>
import jax
import jax.numpy as jnp
from jax.experimental import pallas as pl
from jax.experimental.pallas import tpu as pltpu


def mlp_kernel(x_ref, p_ref, o_ref):
    # x : [B, D_in]                 batch on sublanes, D_in on lanes
    # p : [D_in + 1 + D_out + 1, H] packed params, H on the lane axis:
    #       rows [0, D_in)              -> W1^T            ([D_in, H])
    #       row  D_in                   -> b1              ([1, H])
    #       rows [D_in+1, D_in+1+D_out) -> W2 (native)     ([D_out, H])
    #       row  D_in+1+D_out           -> b2, first D_out lanes valid
    # o : [B, D_out]
    _, d_in = x_ref.shape
    d_out = o_ref.shape[1]

    x = x_ref[...]
    p = p_ref[...]          # [D_in + D_out + 2, H]; one padded vreg, loaded once

    w1t = p[0:d_in, :]                                   # [D_in, H]
    b1 = p[d_in:d_in + 1, :]                             # [1, H]
    w2 = p[d_in + 1:d_in + 1 + d_out, :]                 # [D_out, H]
    b2 = p[d_in + 1 + d_out:d_in + 2 + d_out, :]         # [1, H] (lane j = b2[j])

    # Layer 1 on the VPU: D_in lane-broadcast FMAs on a single [B, H] vreg.
    acc = x[:, 0:1] * w1t[0:1, :]                        # [B, H]
    for k in range(1, d_in):                             # static unroll, D_in=4
        acc = acc + x[:, k:k + 1] * w1t[k:k + 1, :]
    h = jnp.maximum(acc + b1, 0.0)                       # bias + ReLU, f32 VPU

    # Layer 2: per-output-channel cross-lane (XLU) reduction over H.
    for j in range(d_out):                               # static unroll, D_out=1
        yj = jnp.sum(h * w2[j:j + 1, :], axis=1, keepdims=True)   # [B, 1]
        o_ref[:, j:j + 1] = (yj + b2[:, j:j + 1]).astype(o_ref.dtype)


def pack_params(w1, b1, w2, b2):
    """One-time (init-time) packing of PyTorch nn.Linear params.

    w1: [H, D_in], b1: [H], w2: [D_out, H], b2: [D_out]  (native layouts)
    returns: [D_in + D_out + 2, H] f32 buffer consumed by mlp_kernel.
    """
    H, D_in = w1.shape
    D_out = w2.shape[0]
    b2_row = jnp.zeros((1, H), dtype=b2.dtype).at[0, :D_out].set(b2)
    return jnp.concatenate(
        [w1.T.astype(jnp.float32),            # [D_in, H]
         b1.reshape(1, H).astype(jnp.float32),
         w2.astype(jnp.float32),              # [D_out, H]
         b2_row.astype(jnp.float32)],
        axis=0)


@jax.jit
def univariate_linear_model(x, params):
    """Forward pass: relu(x @ W1^T + b1) @ W2^T + b2.

    x      : [B, D_in] float32 (native layout, no per-call transposes)
    params : packed buffer from pack_params()
    returns: [B, D_out]
    """
    B, D_in = x.shape
    n_rows, H = params.shape
    D_out = n_rows - D_in - 2

    flops = 2 * B * (D_in * H + H * D_out)
    bytes_accessed = 4 * (x.size + params.size + B * D_out)

    # Gridless whole-array VMEM operands: at these sizes the kernel is pure
    # fixed-overhead bound, so skip the pipeline a grid=(1,) spec would add.
    return pl.pallas_call(
        mlp_kernel,
        out_shape=jax.ShapeDtypeStruct((B, D_out), x.dtype),
        in_specs=[pl.BlockSpec(memory_space=pltpu.MemorySpace.VMEM),
                  pl.BlockSpec(memory_space=pltpu.MemorySpace.VMEM)],
        out_specs=pl.BlockSpec(memory_space=pltpu.MemorySpace.VMEM),
        cost_estimate=pl.CostEstimate(
            flops=flops, transcendentals=0, bytes_accessed=bytes_accessed),
    )(x, params)


def reference(x, w1, b1, w2, b2):
    h = jnp.maximum(x @ w1.T + b1, 0.0)
    return h @ w2.T + b2


# TODO(synk): fit()/predict() (DataLoader + optimizer loops) are host-side
# training orchestration, not kernel work; only forward() is implemented.

if __name__ == "__main__":
    # Small shapes consistent with UnivariateLinearModel(D_in, H, D_out).
    B, D_in, H, D_out = 8, 4, 32, 1

    key = jax.random.PRNGKey(0)
    kx, kw1, kb1, kw2, kb2 = jax.random.split(key, 5)

    x = jax.random.normal(kx, (B, D_in), dtype=jnp.float32)
    # nn.Linear-style uniform init, PyTorch [out, in] weight layout.
    bound1 = 1.0 / (D_in ** 0.5)
    w1 = jax.random.uniform(kw1, (H, D_in), jnp.float32, -bound1, bound1)
    b1 = jax.random.uniform(kb1, (H,), jnp.float32, -bound1, bound1)
    bound2 = 1.0 / (H ** 0.5)
    w2 = jax.random.uniform(kw2, (D_out, H), jnp.float32, -bound2, bound2)
    b2 = jax.random.uniform(kb2, (D_out,), jnp.float32, -bound2, bound2)

    # Init-time packing (done once; zero per-call layout cost).
    params = jax.block_until_ready(pack_params(w1, b1, w2, b2))

    out = univariate_linear_model(x, params)
    jax.block_until_ready(out)

    ref = reference(x, w1, b1, w2, b2)
    assert out.shape == (B, D_out)
    assert jnp.allclose(out, ref, atol=1e-5, rtol=1e-5)

    print("KERNEL_OK")
</pallas_src>

<mosaic_0001>
module attributes {stable_mosaic.version = 11 : i64} {
  func.func @mlp_kernel(%arg0: memref<8x4xf32, #tpu.memory_space<vmem>>, %arg1: memref<7x32xf32, #tpu.memory_space<vmem>>, %arg2: memref<8x1xf32, #tpu.memory_space<vmem>>) attributes {dimension_semantics = [], scalar_prefetch = 0 : i64, scratch_operands = 0 : i64, tpu.core_type = #tpu.core_type<tc>} {
    %c0 = arith.constant 0 : index
    %c0_0 = arith.constant 0 : index
    %0 = vector.load %arg0[%c0, %c0_0] : memref<8x4xf32, #tpu.memory_space<vmem>>, vector<8x4xf32>
    %c0_1 = arith.constant 0 : index
    %c0_2 = arith.constant 0 : index
    %1 = vector.load %arg1[%c0_1, %c0_2] : memref<7x32xf32, #tpu.memory_space<vmem>>, vector<7x32xf32>
    %2 = vector.extract_strided_slice %1 {offsets = [0, 0], sizes = [4, 32], strides = [1, 1]} : vector<7x32xf32> to vector<4x32xf32>
    %3 = vector.extract_strided_slice %1 {offsets = [4, 0], sizes = [1, 32], strides = [1, 1]} : vector<7x32xf32> to vector<1x32xf32>
    %4 = vector.extract_strided_slice %1 {offsets = [5, 0], sizes = [1, 32], strides = [1, 1]} : vector<7x32xf32> to vector<1x32xf32>
    %5 = vector.extract_strided_slice %1 {offsets = [6, 0], sizes = [1, 32], strides = [1, 1]} : vector<7x32xf32> to vector<1x32xf32>
    %6 = vector.extract_strided_slice %0 {offsets = [0, 0], sizes = [8, 1], strides = [1, 1]} : vector<8x4xf32> to vector<8x1xf32>
    %7 = vector.extract_strided_slice %2 {offsets = [0, 0], sizes = [1, 32], strides = [1, 1]} : vector<4x32xf32> to vector<1x32xf32>
    %8 = vector.broadcast %6 : vector<8x1xf32> to vector<8x32xf32>
    %9 = vector.broadcast %7 : vector<1x32xf32> to vector<8x32xf32>
    %10 = arith.mulf %8, %9 : vector<8x32xf32>
    %11 = vector.extract_strided_slice %0 {offsets = [0, 1], sizes = [8, 1], strides = [1, 1]} : vector<8x4xf32> to vector<8x1xf32>
    %12 = vector.extract_strided_slice %2 {offsets = [1, 0], sizes = [1, 32], strides = [1, 1]} : vector<4x32xf32> to vector<1x32xf32>
    %13 = vector.broadcast %11 : vector<8x1xf32> to vector<8x32xf32>
    %14 = vector.broadcast %12 : vector<1x32xf32> to vector<8x32xf32>
    %15 = arith.mulf %13, %14 : vector<8x32xf32>
    %16 = arith.addf %10, %15 : vector<8x32xf32>
    %17 = vector.extract_strided_slice %0 {offsets = [0, 2], sizes = [8, 1], strides = [1, 1]} : vector<8x4xf32> to vector<8x1xf32>
    %18 = vector.extract_strided_slice %2 {offsets = [2, 0], sizes = [1, 32], strides = [1, 1]} : vector<4x32xf32> to vector<1x32xf32>
    %19 = vector.broadcast %17 : vector<8x1xf32> to vector<8x32xf32>
    %20 = vector.broadcast %18 : vector<1x32xf32> to vector<8x32xf32>
    %21 = arith.mulf %19, %20 : vector<8x32xf32>
    %22 = arith.addf %16, %21 : vector<8x32xf32>
    %23 = vector.extract_strided_slice %0 {offsets = [0, 3], sizes = [8, 1], strides = [1, 1]} : vector<8x4xf32> to vector<8x1xf32>
    %24 = vector.extract_strided_slice %2 {offsets = [3, 0], sizes = [1, 32], strides = [1, 1]} : vector<4x32xf32> to vector<1x32xf32>
    %25 = vector.broadcast %23 : vector<8x1xf32> to vector<8x32xf32>
    %26 = vector.broadcast %24 : vector<1x32xf32> to vector<8x32xf32>
    %27 = arith.mulf %25, %26 : vector<8x32xf32>
    %28 = arith.addf %22, %27 : vector<8x32xf32>
    %29 = vector.broadcast %3 : vector<1x32xf32> to vector<8x32xf32>
    %30 = arith.addf %28, %29 : vector<8x32xf32>
    %cst = arith.constant 0.000000e+00 : f32
    %31 = vector.broadcast %cst : f32 to vector<8x32xf32>
    %32 = arith.maximumf %30, %31 : vector<8x32xf32>
    %33 = vector.broadcast %4 : vector<1x32xf32> to vector<8x32xf32>
    %34 = arith.mulf %32, %33 : vector<8x32xf32>
    %cst_3 = arith.constant dense<0.000000e+00> : vector<8xf32>
    %35 = vector.multi_reduction <add>, %34, %cst_3 [1] : vector<8x32xf32> to vector<8xf32>
    %36 = vector.shape_cast %35 : vector<8xf32> to vector<8x1xf32>
    %37 = vector.extract_strided_slice %5 {offsets = [0, 0], sizes = [1, 1], strides = [1, 1]} : vector<1x32xf32> to vector<1x1xf32>
    %38 = vector.broadcast %37 : vector<1x1xf32> to vector<8x1xf32>
    %39 = arith.addf %36, %38 : vector<8x1xf32>
    %c0_4 = arith.constant 0 : index
    %c0_5 = arith.constant 0 : index
    %40 = vector.load %arg2[%c0_4, %c0_5] : memref<8x1xf32, #tpu.memory_space<vmem>>, vector<8x1xf32>
    tpu.vector_store %arg2[%c0_4, %c0_5], %39 {strides = array<i32>} : memref<8x1xf32, #tpu.memory_space<vmem>>, vector<8x1xf32>,
    return
  }
}

</mosaic_0001>

<llo_original>
// kernel: univariate_linear_model.1
$region0: #{univariate_linear_model.1}
  #allocation0 [shape = 'u32[]', space=smem, size = 0x4, offset = 0x4, fixed_abs, tag = 'smem constant byte address 0x4 - core index']
  #allocation1 [shape = 'u32[72,128]{1,0:T(1,128)}', space=vmem, size = 0x9000, scoped, tag = 'internal scratch']
  %s0 = inlined_call_operand.vmem [shape: f32[8,4], index: 0, kind: input, shape index: {}]
  %s1 = inlined_call_operand.vmem [shape: f32[7,32], index: 1, kind: input, shape index: {}]
  %s2 = inlined_call_operand.vmem [shape: f32[8,1], index: 2, kind: output, shape index: {}]
  %s3 = sld [smem:[#allocation0]]
  $region18: #{univariate_linear_model.1} parent=0
    _
  %s5 = ssub.s32 1, %s3
  %s6 = scalar_select 0, %s5, %s3
  // Predicated region
  $region2: #{univariate_linear_model.1} parent=0 // pred_check
    _
  $region3: #{univariate_linear_model.1} parent=0 // pred_check_branch
    %8 = sbr.rel (0) target = $region5
  $region4: #{univariate_linear_model.1} parent=0 // pred_region
    _
  $region5: #{univariate_linear_model.1} parent=0 // pred_fallthru
    _
  // Predicated region
  $region6: #{univariate_linear_model.1} parent=0 // pred_check
    _
  $region7: #{univariate_linear_model.1} parent=0 // pred_check_branch
    %10 = sbr.rel (0) target = $region9
  $region8: #{univariate_linear_model.1} parent=0 // pred_region
    _
  $region9: #{univariate_linear_model.1} parent=0 // pred_fallthru
    _
  %v11 = vld [vmem:[%s0] sm:$0xff]
  %v12 = vld [vmem:[%s1] sm:$0x7f]
  %14 = vset.pattern.permute.xlu0 0
  %15 = vperm.xlu0 %14, %v11
  %v16 = vpop.permute.xlu0 %15
  %v18 = vperm.slane %v12, 0
  %v19 = vmul.f32 %v16, %v18
  %20 = vset.pattern.permute.xlu0 1
  %21 = vperm.xlu0 %20, %v11
  %v22 = vpop.permute.xlu0 %21
  %v24 = vperm.slane %v12, 1
  %v25 = vmul.f32 %v22, %v24
  %v26 = vadd.f32 %v19, %v25
  %27 = vset.pattern.permute.xlu0 2
  %28 = vperm.xlu0 %27, %v11
  %v29 = vpop.permute.xlu0 %28
  %v31 = vperm.slane %v12, 2
  %v32 = vmul.f32 %v29, %v31
  %v33 = vadd.f32 %v26, %v32
  %34 = vset.pattern.permute.xlu0 3
  %35 = vperm.xlu0 %34, %v11
  %v36 = vpop.permute.xlu0 %35
  %v38 = vperm.slane %v12, 3
  %v39 = vmul.f32 %v36, %v38
  %v40 = vadd.f32 %v33, %v39
  %v41 = vperm.slane %v12, 4
  %v42 = vadd.f32 %v40, %v41
  %v43 = vmax.f32 %v42, 0.0
  %v44 = vperm.slane %v12, 5
  %v45 = vmul.f32 %v43, %v44
  %vm46 = vcmask 261120
  %v47 = vsel %vm46, %v45, 0.0
  %48 = vadd.xlane.f32.xlu0 %v47
  %v49 = vpop.xlane.xlu0 %48
  %v50 = vperm.slane %v12, 6
  %v51 = vadd.f32 %v49, %v50
  %vm52 = vcmask 7168
  %53 = vst.msk [vmem:[%s2] sm:$0xff] %vm52, %v51
  // Predicated region
  $region10: #{univariate_linear_model.1} parent=0 // pred_check
    _
  $region11: #{univariate_linear_model.1} parent=0 // pred_check_branch
    %55 = sbr.rel (0) target = $region13
  $region12: #{univariate_linear_model.1} parent=0 // pred_region
    _
  $region13: #{univariate_linear_model.1} parent=0 // pred_fallthru
    _
  // Predicated region
  $region14: #{univariate_linear_model.1} parent=0 // pred_check
    _
  $region15: #{univariate_linear_model.1} parent=0 // pred_check_branch
    %57 = sbr.rel (0) target = $region17
  $region16: #{univariate_linear_model.1} parent=0 // pred_region
    _
  $region17: #{univariate_linear_model.1} parent=0 // pred_fallthru
    _

</llo_original>
